<compile_context>
chip_gen: v5e
topology: v5e:2x2
jax: 0.10.0
libtpu: 0.0.40
codegen_flags: <defaults>
</compile_context>

<pallas_src>
import jax
import jax.numpy as jnp
from jax.experimental import pallas as pl
from jax.experimental.pallas import tpu as pltpu

# ---------------- synthetic "default_args" ----------------
PVRNN_MTRNN_SIZE = 32
HIDDEN = 32
OBJECTS = 3
OBJECT_SHAPE = 5
COMM_SHAPE = 8
MAX_COMM_LEN = 8
IN_FEATURES = PVRNN_MTRNN_SIZE + 2 * HIDDEN          # 96
IN_PAD = 128                                         # feature dim padded to a full lane tile
PRELU_A = 0.25                                       # torch nn.PReLU() default slope
TAU = 1.0                                            # MTRNN time constant (specialized == 1)
CONV_KERNELS = (1, 3, 5, 7)
CONV_OC = HIDDEN // 4                                # 8

OBJ_W = OBJECTS * OBJECT_SHAPE                       # 15
COMM_W = MAX_COMM_LEN * COMM_SHAPE                   # 64
OUT_W = 128                                          # lane-dense packed output width

# bf16 operands roughly 2-3x the MXU rate of the conv matmul on v5e/v6e; kept f32 by default
# because the EOS mask compares near-tied scores (review correctness_concerns #5).
MATMUL_DTYPE = jnp.float32


def _mm(a, b):
    return jnp.dot(a.astype(MATMUL_DTYPE), b.astype(MATMUL_DTYPE),
                   preferred_element_type=jnp.float32)


# ============================ fused Obs_OUT kernel ============================
def _obs_kernel(x_ref, w_in_ref, b_in_ref, ow2_ref, ob2_ref, ow3_ref, ob3_ref,
                wh_ref, wbig_ref, bbig_ref, wobd_ref, bo_ref,
                p_ref, g_ref, t_ref, out_ref, hs_ref):
    H, L, C = HIDDEN, MAX_COMM_LEN, COMM_SHAPE
    prelu = lambda v: jnp.where(v > 0, v, PRELU_A * v)   # Dropout(0.2) = identity (eval)

    x = x_ref[...]                                                       # (TB, 128)

    # Shared first matmul: cols [0:H) = objects fc1, [H:2H) = MTRNN input projection
    # (x @ wx + bx + bh), which is loop-invariant and computed exactly once.
    t0 = _mm(x, w_in_ref[...]) + b_in_ref[...]                           # (TB, 64)
    h1 = prelu(t0[:, :H])
    xin = t0[:, H:2 * H]

    # ---- Objects_OUT MLP tail (output pre-placed in a 64-lane block: 15 real + 49 zero) ----
    h2 = prelu(_mm(h1, ow2_ref[...]) + ob2_ref[...])
    obj64 = _mm(h2, ow3_ref[...]) + ob3_ref[...]                         # (TB, 64)

    # ---- MTRNN unrolled (tau == 1): h <- tanh(xin + h @ wh); states staged B-major in VMEM ----
    wh = wh_ref[...]
    h = jnp.tanh(xin)                                                    # step 0: prev state is 0
    hs_ref[:, 0:H] = h
    for l in range(1, L):
        h = jnp.tanh(xin + _mm(h, wh))
        hs_ref[:, l * H:(l + 1) * H] = h

    # ---- Ted_Conv1d for ALL 8 steps as ONE block-banded matmul (no window/shift concats) ----
    conv = prelu(_mm(hs_ref[...], wbig_ref[...]) + bbig_ref[...])        # (TB, 256)

    # ---- comm_out as block-diagonal matmul -> comm lands directly in final lane layout ----
    out = _mm(conv, wobd_ref[...]) + bo_ref[...]                         # (TB, 64)

    # ---- create_comm_mask via three tiny constant matmuls (no cross-lane reduces/reshapes) ----
    # TODO(synk): create_comm_mask source unavailable; assume EOS == column 0 is the step max.
    col0 = jnp.dot(out, p_ref[...], preferred_element_type=jnp.float32)  # step col-0, bcast in-group
    ge = (col0 >= out).astype(jnp.float32)
    grp_sum = jnp.dot(ge, g_ref[...], preferred_element_type=jnp.float32)   # in-group sum (c != 0)
    is_eos = (grp_sum > (C - 1.5)).astype(jnp.float32)                   # 1 iff col0 >= all others
    prefix = jnp.dot(is_eos, t_ref[...], preferred_element_type=jnp.float32)  # prior-step EOS count
    comm = jnp.where(prefix < 0.5, out, 0.0)                             # (TB, 64)

    out_ref[...] = jnp.concatenate([comm, obj64], axis=-1)               # one unmasked 128-lane store


# ============================== weight packing ===============================
def pack_params(p):
    """Pre-pack weights so the fused kernel sees few, matmul-friendly operands."""
    H, L, C, OC = HIDDEN, MAX_COMM_LEN, COMM_SHAPE, CONV_OC

    # fused first layer [objects fc1 | MTRNN input proj], zero-padded to 128 input rows
    w_in = jnp.zeros((IN_PAD, 2 * H), jnp.float32)
    w_in = w_in.at[:IN_FEATURES, :H].set(p["ow1"])
    w_in = w_in.at[:IN_FEATURES, H:].set(p["wx"])
    b_in = jnp.concatenate([p["ob1"], p["bx"] + p["bh"]], axis=-1)       # (1, 64)

    # objects final layer padded to a 64-lane block (cols 0..14 real)
    ow3 = jnp.zeros((H, 64), jnp.float32).at[:, :OBJ_W].set(p["ow3"])
    ob3 = jnp.zeros((1, 64), jnp.float32).at[:, :OBJ_W].set(p["ob3"])

    # Ted_Conv1d as a (L*H, L*H) block-banded matrix: column block l = conv output of step l,
    # row block r = MTRNN state r; block (r, l) holds tap weights of offset r - l.
    wbig = jnp.zeros((L * H, L * H), jnp.float32)
    for kidx, k in enumerate(CONV_KERNELS):
        pad = (k - 1) // 2
        col = kidx * OC
        for t in range(k):
            for l in range(L):
                r = l + t - pad
                if 0 <= r < L:
                    wbig = wbig.at[r * H:(r + 1) * H,
                                   l * H + col:l * H + col + OC].set(p[f"cw{k}"][t])
    bbig = jnp.tile(jnp.concatenate([p[f"cb{k}"] for k in CONV_KERNELS], axis=-1), (1, L))

    # block-diagonal comm_out weight: (TB, L*H) @ wo_bd -> (TB, L*C) already in final lanes
    wo_bd = jnp.zeros((L * H, L * C), jnp.float32)
    for l in range(L):
        wo_bd = wo_bd.at[l * H:(l + 1) * H, l * C:(l + 1) * C].set(p["wo"])
    bo_t = jnp.tile(p["bo"], (1, L))                                     # (1, 64)

    # EOS-mask helper constants (all work goes to the MXU, which is idle slack here)
    lane = jnp.arange(L * C)
    grp = lane // C
    P = (lane[:, None] == (grp * C)[None, :]).astype(jnp.float32)        # broadcast step col-0
    G = ((grp[:, None] == grp[None, :]) & (lane[:, None] % C != 0)).astype(jnp.float32)
    T = (grp[:, None] < grp[None, :]).astype(jnp.float32)                # strict prior-step sum

    return dict(w_in=w_in, b_in=b_in, ow2=p["ow2"], ob2=p["ob2"], ow3=ow3, ob3=ob3,
                wh=p["wh"], wbig=wbig, bbig=bbig, wo_bd=wo_bd, bo_t=bo_t, P=P, G=G, T=T)


def _round_up(n, m):
    return ((n + m - 1) // m) * m


# ================================ Obs_OUT =====================================
def obs_out_forward(h_w_action, params, *, max_tile=512):
    if h_w_action.ndim == 2:                      # unsqueeze(1) like the torch code
        h_w_action = h_w_action[:, None, :]
    E, S, F = h_w_action.shape
    B = E * S
    xf = h_w_action.reshape(B, F).astype(jnp.float32)
    xf = jnp.pad(xf, ((0, 0), (0, IN_PAD - F)))   # feature pad 96 -> 128 (lane-dense input)

    # Batch tile: as large as max_tile but split so the grid has >= 2 steps when possible
    # (both v7x TensorCores get work); always a multiple of 8 sublanes.
    B8 = _round_up(B, 8)
    TB = min(max_tile, max(8, _round_up((B8 + 1) // 2, 8)))
    Bp = _round_up(B, TB)
    if Bp != B:
        xf = jnp.pad(xf, ((0, Bp - B), (0, 0)))

    pk = pack_params(params)
    weights = [pk[n] for n in ("w_in", "b_in", "ow2", "ob2", "ow3", "ob3",
                               "wh", "wbig", "bbig", "wo_bd", "bo_t", "P", "G", "T")]
    in_specs = [pl.BlockSpec((TB, IN_PAD), lambda i: (i, 0))]
    in_specs += [pl.BlockSpec(w.shape, lambda i: (0, 0)) for w in weights]

    slab = pl.pallas_call(
        _obs_kernel,
        out_shape=jax.ShapeDtypeStruct((Bp, OUT_W), jnp.float32),
        grid=(Bp // TB,),
        in_specs=in_specs,
        out_specs=pl.BlockSpec((TB, OUT_W), lambda i: (i, 0)),
        scratch_shapes=[pltpu.VMEM((TB, MAX_COMM_LEN * HIDDEN), jnp.float32)],
        compiler_params=pltpu.CompilerParams(dimension_semantics=("parallel",)),
    )(xf, *weights)

    comm_pred = slab[:B, :COMM_W].reshape(E, S, MAX_COMM_LEN, COMM_SHAPE)
    objects_pred = slab[:B, COMM_W:COMM_W + OBJ_W].reshape(E, S, OBJECTS, OBJECT_SHAPE)
    return objects_pred, comm_pred


# ============================ deterministic init ============================
def init_params(key):
    ks = jax.random.split(key, 10)

    def lin(k, fan_in, fan_out):
        lim = fan_in ** -0.5
        kw, kb = jax.random.split(k)
        w = jax.random.uniform(kw, (fan_in, fan_out), jnp.float32, -lim, lim)
        b = jax.random.uniform(kb, (1, fan_out), jnp.float32, -lim, lim)
        return w, b

    p = {}
    p["ow1"], p["ob1"] = lin(ks[0], IN_FEATURES, HIDDEN)
    p["ow2"], p["ob2"] = lin(ks[1], HIDDEN, HIDDEN)
    p["ow3"], p["ob3"] = lin(ks[2], HIDDEN, OBJECTS * OBJECT_SHAPE)
    p["wx"], p["bx"] = lin(ks[3], IN_FEATURES, HIDDEN)
    p["wh"], p["bh"] = lin(ks[4], HIDDEN, HIDDEN)
    for i, ksz in enumerate(CONV_KERNELS):
        kw, kb = jax.random.split(ks[5 + i])
        lim = (HIDDEN * ksz) ** -0.5
        # conv weight stored as (k, in_channels, out_channels) = transposed torch layout
        p[f"cw{ksz}"] = jax.random.uniform(kw, (ksz, HIDDEN, CONV_OC), jnp.float32, -lim, lim)
        p[f"cb{ksz}"] = jax.random.uniform(kb, (1, CONV_OC), jnp.float32, -lim, lim)
    p["wo"], p["bo"] = lin(ks[9], HIDDEN, COMM_SHAPE)
    return p


# ============================ pure-JAX reference ============================
def reference(x, p):
    E, S, F = x.shape
    xf = x.reshape(E * S, F)
    prelu = lambda v: jnp.where(v > 0, v, PRELU_A * v)
    h = prelu(xf @ p["ow1"] + p["ob1"])
    h = prelu(h @ p["ow2"] + p["ob2"])
    obj = (h @ p["ow3"] + p["ob3"]).reshape(E, S, OBJECTS, OBJECT_SHAPE)

    hcur = jnp.zeros((E * S, HIDDEN), jnp.float32)
    hs = []
    for _ in range(MAX_COMM_LEN):
        r = xf @ p["wx"] + p["bx"] + hcur @ p["wh"] + p["bh"]
        hcur = (1 - 1 / TAU) * hcur + (1 / TAU) * jnp.tanh(r)
        hs.append(hcur)
    hs = jnp.stack(hs, axis=1)                                        # (B, L, H)
    maxpad = (max(CONV_KERNELS) - 1) // 2
    hs_pad = jnp.pad(hs, ((0, 0), (maxpad, maxpad), (0, 0)))
    branches = []
    for k in CONV_KERNELS:
        pad = (k - 1) // 2
        acc = jnp.broadcast_to(p[f"cb{k}"], (E * S, MAX_COMM_LEN, CONV_OC))
        for t in range(k):
            win = hs_pad[:, maxpad - pad + t:maxpad - pad + t + MAX_COMM_LEN, :]
            acc = acc + jnp.einsum("blh,ho->blo", win, p[f"cw{k}"][t])
        branches.append(acc)
    conv = prelu(jnp.concatenate(branches, axis=-1))
    out = conv @ p["wo"] + p["bo"]                                    # (B, L, C)
    is_eos = (out[..., 0:1] >= out.max(-1, keepdims=True)).astype(jnp.float32)
    prefix = jnp.cumsum(is_eos, axis=1) - is_eos
    mask = (prefix < 0.5).astype(jnp.float32)
    comm = (out * mask).reshape(E, S, MAX_COMM_LEN, COMM_SHAPE)
    return obj, comm


if __name__ == "__main__":
    key = jax.random.PRNGKey(0)
    pk, xk = jax.random.split(key)
    params = init_params(pk)
    x = jax.random.normal(xk, (2, 3, IN_FEATURES), jnp.float32)   # (episodes, steps, feats)

    objects_pred, comm_pred = obs_out_forward(x, params)
    jax.block_until_ready((objects_pred, comm_pred))

    assert objects_pred.shape == (2, 3, OBJECTS, OBJECT_SHAPE)
    assert comm_pred.shape == (2, 3, MAX_COMM_LEN, COMM_SHAPE)

    ref_obj, ref_comm = reference(x, params)
    assert jnp.allclose(objects_pred, ref_obj, atol=5e-2, rtol=5e-2)
    assert jnp.allclose(comm_pred, ref_comm, atol=5e-2, rtol=5e-2)

    print("KERNEL_OK")
</pallas_src>

<mosaic_0001>
module attributes {stable_mosaic.version = 11 : i64} {
  func.func @_obs_kernel(%arg0: i32, %arg1: memref<8x128xf32, #tpu.memory_space<vmem>>, %arg2: memref<128x64xf32, #tpu.memory_space<vmem>>, %arg3: memref<1x64xf32, #tpu.memory_space<vmem>>, %arg4: memref<32x32xf32, #tpu.memory_space<vmem>>, %arg5: memref<1x32xf32, #tpu.memory_space<vmem>>, %arg6: memref<32x64xf32, #tpu.memory_space<vmem>>, %arg7: memref<1x64xf32, #tpu.memory_space<vmem>>, %arg8: memref<32x32xf32, #tpu.memory_space<vmem>>, %arg9: memref<256x256xf32, #tpu.memory_space<vmem>>, %arg10: memref<1x256xf32, #tpu.memory_space<vmem>>, %arg11: memref<256x64xf32, #tpu.memory_space<vmem>>, %arg12: memref<1x64xf32, #tpu.memory_space<vmem>>, %arg13: memref<64x64xf32, #tpu.memory_space<vmem>>, %arg14: memref<64x64xf32, #tpu.memory_space<vmem>>, %arg15: memref<64x64xf32, #tpu.memory_space<vmem>>, %arg16: memref<8x128xf32, #tpu.memory_space<vmem>>, %arg17: memref<8x256xf32, #tpu.memory_space<vmem>>) attributes {dimension_semantics = [#tpu.dimension_semantics<parallel>], iteration_bounds = array<i64: 1>, scalar_prefetch = 0 : i64, scratch_operands = 1 : i64, tpu.core_type = #tpu.core_type<tc>, window_params = [{transform_indices = @transform_0, window_bounds = array<i64: 8, 128>}, {pipeline_mode = #tpu.pipeline_mode<synchronous>, transform_indices = @transform_1, window_bounds = array<i64: 128, 64>}, {pipeline_mode = #tpu.pipeline_mode<synchronous>, transform_indices = @transform_2, window_bounds = array<i64: 1, 64>}, {pipeline_mode = #tpu.pipeline_mode<synchronous>, transform_indices = @transform_3, window_bounds = array<i64: 32, 32>}, {pipeline_mode = #tpu.pipeline_mode<synchronous>, transform_indices = @transform_4, window_bounds = array<i64: 1, 32>}, {pipeline_mode = #tpu.pipeline_mode<synchronous>, transform_indices = @transform_5, window_bounds = array<i64: 32, 64>}, {pipeline_mode = #tpu.pipeline_mode<synchronous>, transform_indices = @transform_6, window_bounds = array<i64: 1, 64>}, {pipeline_mode = #tpu.pipeline_mode<synchronous>, transform_indices = @transform_7, window_bounds = array<i64: 32, 32>}, {pipeline_mode = #tpu.pipeline_mode<synchronous>, transform_indices = @transform_8, window_bounds = array<i64: 256, 256>}, {pipeline_mode = #tpu.pipeline_mode<synchronous>, transform_indices = @transform_9, window_bounds = array<i64: 1, 256>}, {pipeline_mode = #tpu.pipeline_mode<synchronous>, transform_indices = @transform_10, window_bounds = array<i64: 256, 64>}, {pipeline_mode = #tpu.pipeline_mode<synchronous>, transform_indices = @transform_11, window_bounds = array<i64: 1, 64>}, {pipeline_mode = #tpu.pipeline_mode<synchronous>, transform_indices = @transform_12, window_bounds = array<i64: 64, 64>}, {pipeline_mode = #tpu.pipeline_mode<synchronous>, transform_indices = @transform_13, window_bounds = array<i64: 64, 64>}, {pipeline_mode = #tpu.pipeline_mode<synchronous>, transform_indices = @transform_14, window_bounds = array<i64: 64, 64>}, {transform_indices = @transform_15, window_bounds = array<i64: 8, 128>}]} {
    %c0 = arith.constant 0 : index
    %c0_0 = arith.constant 0 : index
    %0 = vector.load %arg1[%c0, %c0_0] : memref<8x128xf32, #tpu.memory_space<vmem>>, vector<8x128xf32>
    %c0_1 = arith.constant 0 : index
    %c0_2 = arith.constant 0 : index
    %1 = vector.load %arg2[%c0_1, %c0_2] : memref<128x64xf32, #tpu.memory_space<vmem>>, vector<128x64xf32>
    %cst = arith.constant dense<0.000000e+00> : vector<8x64xf32>
    %2 = tpu.matmul %0, %1, %cst {dimension_numbers = #tpu.dot_dimension_numbers<[1], [0], [0], [1], [0, 0, 1, 1], [], []>} : vector<8x128xf32>, vector<128x64xf32>, vector<8x64xf32> -> vector<8x64xf32>
    %c0_3 = arith.constant 0 : index
    %c0_4 = arith.constant 0 : index
    %3 = vector.load %arg3[%c0_3, %c0_4] : memref<1x64xf32, #tpu.memory_space<vmem>>, vector<1x64xf32>
    %4 = vector.broadcast %3 : vector<1x64xf32> to vector<8x64xf32>
    %5 = arith.addf %2, %4 : vector<8x64xf32>
    %6 = vector.extract_strided_slice %5 {offsets = [0, 0], sizes = [8, 32], strides = [1, 1]} : vector<8x64xf32> to vector<8x32xf32>
    %cst_5 = arith.constant 0.000000e+00 : f32
    %7 = vector.broadcast %cst_5 : f32 to vector<8x32xf32>
    %8 = arith.cmpf ogt, %6, %7 : vector<8x32xf32>
    %cst_6 = arith.constant 2.500000e-01 : f32
    %9 = vector.broadcast %cst_6 : f32 to vector<8x32xf32>
    %10 = arith.mulf %9, %6 : vector<8x32xf32>
    %11 = arith.select %8, %6, %10 : vector<8x32xi1>, vector<8x32xf32>
    %12 = vector.extract_strided_slice %5 {offsets = [0, 32], sizes = [8, 32], strides = [1, 1]} : vector<8x64xf32> to vector<8x32xf32>
    %c0_7 = arith.constant 0 : index
    %c0_8 = arith.constant 0 : index
    %13 = vector.load %arg4[%c0_7, %c0_8] : memref<32x32xf32, #tpu.memory_space<vmem>>, vector<32x32xf32>
    %cst_9 = arith.constant dense<0.000000e+00> : vector<8x32xf32>
    %14 = tpu.matmul %11, %13, %cst_9 {dimension_numbers = #tpu.dot_dimension_numbers<[1], [0], [0], [1], [0, 0, 1, 1], [], []>} : vector<8x32xf32>, vector<32x32xf32>, vector<8x32xf32> -> vector<8x32xf32>
    %c0_10 = arith.constant 0 : index
    %c0_11 = arith.constant 0 : index
    %15 = vector.load %arg5[%c0_10, %c0_11] : memref<1x32xf32, #tpu.memory_space<vmem>>, vector<1x32xf32>
    %16 = vector.broadcast %15 : vector<1x32xf32> to vector<8x32xf32>
    %17 = arith.addf %14, %16 : vector<8x32xf32>
    %cst_12 = arith.constant 0.000000e+00 : f32
    %18 = vector.broadcast %cst_12 : f32 to vector<8x32xf32>
    %19 = arith.cmpf ogt, %17, %18 : vector<8x32xf32>
    %cst_13 = arith.constant 2.500000e-01 : f32
    %20 = vector.broadcast %cst_13 : f32 to vector<8x32xf32>
    %21 = arith.mulf %20, %17 : vector<8x32xf32>
    %22 = arith.select %19, %17, %21 : vector<8x32xi1>, vector<8x32xf32>
    %c0_14 = arith.constant 0 : index
    %c0_15 = arith.constant 0 : index
    %23 = vector.load %arg6[%c0_14, %c0_15] : memref<32x64xf32, #tpu.memory_space<vmem>>, vector<32x64xf32>
    %cst_16 = arith.constant dense<0.000000e+00> : vector<8x64xf32>
    %24 = tpu.matmul %22, %23, %cst_16 {dimension_numbers = #tpu.dot_dimension_numbers<[1], [0], [0], [1], [0, 0, 1, 1], [], []>} : vector<8x32xf32>, vector<32x64xf32>, vector<8x64xf32> -> vector<8x64xf32>
    %c0_17 = arith.constant 0 : index
    %c0_18 = arith.constant 0 : index
    %25 = vector.load %arg7[%c0_17, %c0_18] : memref<1x64xf32, #tpu.memory_space<vmem>>, vector<1x64xf32>
    %26 = vector.broadcast %25 : vector<1x64xf32> to vector<8x64xf32>
    %27 = arith.addf %24, %26 : vector<8x64xf32>
    %c0_19 = arith.constant 0 : index
    %c0_20 = arith.constant 0 : index
    %28 = vector.load %arg8[%c0_19, %c0_20] : memref<32x32xf32, #tpu.memory_space<vmem>>, vector<32x32xf32>
    %29 = math.tanh %12 : vector<8x32xf32>
    %c0_21 = arith.constant 0 : index
    %c0_22 = arith.constant 0 : index
    %30 = vector.load %arg17[%c0_21, %c0_22] : memref<8x256xf32, #tpu.memory_space<vmem>>, vector<8x32xf32>
    tpu.vector_store %arg17[%c0_21, %c0_22], %29 {strides = array<i32>} : memref<8x256xf32, #tpu.memory_space<vmem>>, vector<8x32xf32>,
    %cst_23 = arith.constant dense<0.000000e+00> : vector<8x32xf32>
    %31 = tpu.matmul %29, %28, %cst_23 {dimension_numbers = #tpu.dot_dimension_numbers<[1], [0], [0], [1], [0, 0, 1, 1], [], []>} : vector<8x32xf32>, vector<32x32xf32>, vector<8x32xf32> -> vector<8x32xf32>
    %32 = arith.addf %12, %31 : vector<8x32xf32>
    %33 = math.tanh %32 : vector<8x32xf32>
    %c0_24 = arith.constant 0 : index
    %c32 = arith.constant 32 : index
    %34 = vector.load %arg17[%c0_24, %c32] : memref<8x256xf32, #tpu.memory_space<vmem>>, vector<8x32xf32>
    tpu.vector_store %arg17[%c0_24, %c32], %33 {strides = array<i32>} : memref<8x256xf32, #tpu.memory_space<vmem>>, vector<8x32xf32>,
    %cst_25 = arith.constant dense<0.000000e+00> : vector<8x32xf32>
    %35 = tpu.matmul %33, %28, %cst_25 {dimension_numbers = #tpu.dot_dimension_numbers<[1], [0], [0], [1], [0, 0, 1, 1], [], []>} : vector<8x32xf32>, vector<32x32xf32>, vector<8x32xf32> -> vector<8x32xf32>
    %36 = arith.addf %12, %35 : vector<8x32xf32>
    %37 = math.tanh %36 : vector<8x32xf32>
    %c0_26 = arith.constant 0 : index
    %c64 = arith.constant 64 : index
    %38 = vector.load %arg17[%c0_26, %c64] : memref<8x256xf32, #tpu.memory_space<vmem>>, vector<8x32xf32>
    tpu.vector_store %arg17[%c0_26, %c64], %37 {strides = array<i32>} : memref<8x256xf32, #tpu.memory_space<vmem>>, vector<8x32xf32>,
    %cst_27 = arith.constant dense<0.000000e+00> : vector<8x32xf32>
    %39 = tpu.matmul %37, %28, %cst_27 {dimension_numbers = #tpu.dot_dimension_numbers<[1], [0], [0], [1], [0, 0, 1, 1], [], []>} : vector<8x32xf32>, vector<32x32xf32>, vector<8x32xf32> -> vector<8x32xf32>
    %40 = arith.addf %12, %39 : vector<8x32xf32>
    %41 = math.tanh %40 : vector<8x32xf32>
    %c0_28 = arith.constant 0 : index
    %c96 = arith.constant 96 : index
    %42 = vector.load %arg17[%c0_28, %c96] : memref<8x256xf32, #tpu.memory_space<vmem>>, vector<8x32xf32>
    tpu.vector_store %arg17[%c0_28, %c96], %41 {strides = array<i32>} : memref<8x256xf32, #tpu.memory_space<vmem>>, vector<8x32xf32>,
    %cst_29 = arith.constant dense<0.000000e+00> : vector<8x32xf32>
    %43 = tpu.matmul %41, %28, %cst_29 {dimension_numbers = #tpu.dot_dimension_numbers<[1], [0], [0], [1], [0, 0, 1, 1], [], []>} : vector<8x32xf32>, vector<32x32xf32>, vector<8x32xf32> -> vector<8x32xf32>
    %44 = arith.addf %12, %43 : vector<8x32xf32>
    %45 = math.tanh %44 : vector<8x32xf32>
    %c0_30 = arith.constant 0 : index
    %c128 = arith.constant 128 : index
    %46 = vector.load %arg17[%c0_30, %c128] : memref<8x256xf32, #tpu.memory_space<vmem>>, vector<8x32xf32>
    tpu.vector_store %arg17[%c0_30, %c128], %45 {strides = array<i32>} : memref<8x256xf32, #tpu.memory_space<vmem>>, vector<8x32xf32>,
    %cst_31 = arith.constant dense<0.000000e+00> : vector<8x32xf32>
    %47 = tpu.matmul %45, %28, %cst_31 {dimension_numbers = #tpu.dot_dimension_numbers<[1], [0], [0], [1], [0, 0, 1, 1], [], []>} : vector<8x32xf32>, vector<32x32xf32>, vector<8x32xf32> -> vector<8x32xf32>
    %48 = arith.addf %12, %47 : vector<8x32xf32>
    %49 = math.tanh %48 : vector<8x32xf32>
    %c0_32 = arith.constant 0 : index
    %c160 = arith.constant 160 : index
    %50 = vector.load %arg17[%c0_32, %c160] : memref<8x256xf32, #tpu.memory_space<vmem>>, vector<8x32xf32>
    tpu.vector_store %arg17[%c0_32, %c160], %49 {strides = array<i32>} : memref<8x256xf32, #tpu.memory_space<vmem>>, vector<8x32xf32>,
    %cst_33 = arith.constant dense<0.000000e+00> : vector<8x32xf32>
    %51 = tpu.matmul %49, %28, %cst_33 {dimension_numbers = #tpu.dot_dimension_numbers<[1], [0], [0], [1], [0, 0, 1, 1], [], []>} : vector<8x32xf32>, vector<32x32xf32>, vector<8x32xf32> -> vector<8x32xf32>
    %52 = arith.addf %12, %51 : vector<8x32xf32>
    %53 = math.tanh %52 : vector<8x32xf32>
    %c0_34 = arith.constant 0 : index
    %c192 = arith.constant 192 : index
    %54 = vector.load %arg17[%c0_34, %c192] : memref<8x256xf32, #tpu.memory_space<vmem>>, vector<8x32xf32>
    tpu.vector_store %arg17[%c0_34, %c192], %53 {strides = array<i32>} : memref<8x256xf32, #tpu.memory_space<vmem>>, vector<8x32xf32>,
    %cst_35 = arith.constant dense<0.000000e+00> : vector<8x32xf32>
    %55 = tpu.matmul %53, %28, %cst_35 {dimension_numbers = #tpu.dot_dimension_numbers<[1], [0], [0], [1], [0, 0, 1, 1], [], []>} : vector<8x32xf32>, vector<32x32xf32>, vector<8x32xf32> -> vector<8x32xf32>
    %56 = arith.addf %12, %55 : vector<8x32xf32>
    %57 = math.tanh %56 : vector<8x32xf32>
    %c0_36 = arith.constant 0 : index
    %c224 = arith.constant 224 : index
    %58 = vector.load %arg17[%c0_36, %c224] : memref<8x256xf32, #tpu.memory_space<vmem>>, vector<8x32xf32>
    tpu.vector_store %arg17[%c0_36, %c224], %57 {strides = array<i32>} : memref<8x256xf32, #tpu.memory_space<vmem>>, vector<8x32xf32>,
    %c0_37 = arith.constant 0 : index
    %c0_38 = arith.constant 0 : index
    %59 = vector.load %arg17[%c0_37, %c0_38] : memref<8x256xf32, #tpu.memory_space<vmem>>, vector<8x256xf32>
    %c0_39 = arith.constant 0 : index
    %c0_40 = arith.constant 0 : index
    %60 = vector.load %arg9[%c0_39, %c0_40] : memref<256x256xf32, #tpu.memory_space<vmem>>, vector<256x256xf32>
    %cst_41 = arith.constant dense<0.000000e+00> : vector<8x256xf32>
    %61 = tpu.matmul %59, %60, %cst_41 {dimension_numbers = #tpu.dot_dimension_numbers<[1], [0], [0], [1], [0, 0, 1, 1], [], []>} : vector<8x256xf32>, vector<256x256xf32>, vector<8x256xf32> -> vector<8x256xf32>
    %c0_42 = arith.constant 0 : index
    %c0_43 = arith.constant 0 : index
    %62 = vector.load %arg10[%c0_42, %c0_43] : memref<1x256xf32, #tpu.memory_space<vmem>>, vector<1x256xf32>
    %63 = vector.broadcast %62 : vector<1x256xf32> to vector<8x256xf32>
    %64 = arith.addf %61, %63 : vector<8x256xf32>
    %cst_44 = arith.constant 0.000000e+00 : f32
    %65 = vector.broadcast %cst_44 : f32 to vector<8x256xf32>
    %66 = arith.cmpf ogt, %64, %65 : vector<8x256xf32>
    %cst_45 = arith.constant 2.500000e-01 : f32
    %67 = vector.broadcast %cst_45 : f32 to vector<8x256xf32>
    %68 = arith.mulf %67, %64 : vector<8x256xf32>
    %69 = arith.select %66, %64, %68 : vector<8x256xi1>, vector<8x256xf32>
    %c0_46 = arith.constant 0 : index
    %c0_47 = arith.constant 0 : index
    %70 = vector.load %arg11[%c0_46, %c0_47] : memref<256x64xf32, #tpu.memory_space<vmem>>, vector<256x64xf32>
    %cst_48 = arith.constant dense<0.000000e+00> : vector<8x64xf32>
    %71 = tpu.matmul %69, %70, %cst_48 {dimension_numbers = #tpu.dot_dimension_numbers<[1], [0], [0], [1], [0, 0, 1, 1], [], []>} : vector<8x256xf32>, vector<256x64xf32>, vector<8x64xf32> -> vector<8x64xf32>
    %c0_49 = arith.constant 0 : index
    %c0_50 = arith.constant 0 : index
    %72 = vector.load %arg12[%c0_49, %c0_50] : memref<1x64xf32, #tpu.memory_space<vmem>>, vector<1x64xf32>
    %73 = vector.broadcast %72 : vector<1x64xf32> to vector<8x64xf32>
    %74 = arith.addf %71, %73 : vector<8x64xf32>
    %c0_51 = arith.constant 0 : index
    %c0_52 = arith.constant 0 : index
    %75 = vector.load %arg13[%c0_51, %c0_52] : memref<64x64xf32, #tpu.memory_space<vmem>>, vector<64x64xf32>
    %cst_53 = arith.constant dense<0.000000e+00> : vector<8x64xf32>
    %76 = tpu.matmul %74, %75, %cst_53 {dimension_numbers = #tpu.dot_dimension_numbers<[1], [0], [0], [1], [0, 0, 1, 1], [], []>} : vector<8x64xf32>, vector<64x64xf32>, vector<8x64xf32> -> vector<8x64xf32>
    %77 = arith.cmpf oge, %76, %74 : vector<8x64xf32>
    %78 = arith.extui %77 : vector<8x64xi1> to vector<8x64xi32>
    %79 = arith.sitofp %78 : vector<8x64xi32> to vector<8x64xf32>
    %c0_54 = arith.constant 0 : index
    %c0_55 = arith.constant 0 : index
    %80 = vector.load %arg14[%c0_54, %c0_55] : memref<64x64xf32, #tpu.memory_space<vmem>>, vector<64x64xf32>
    %cst_56 = arith.constant dense<0.000000e+00> : vector<8x64xf32>
    %81 = tpu.matmul %79, %80, %cst_56 {dimension_numbers = #tpu.dot_dimension_numbers<[1], [0], [0], [1], [0, 0, 1, 1], [], []>} : vector<8x64xf32>, vector<64x64xf32>, vector<8x64xf32> -> vector<8x64xf32>
    %cst_57 = arith.constant 6.500000e+00 : f32
    %82 = vector.broadcast %cst_57 : f32 to vector<8x64xf32>
    %83 = arith.cmpf ogt, %81, %82 : vector<8x64xf32>
    %84 = arith.extui %83 : vector<8x64xi1> to vector<8x64xi32>
    %85 = arith.sitofp %84 : vector<8x64xi32> to vector<8x64xf32>
    %c0_58 = arith.constant 0 : index
    %c0_59 = arith.constant 0 : index
    %86 = vector.load %arg15[%c0_58, %c0_59] : memref<64x64xf32, #tpu.memory_space<vmem>>, vector<64x64xf32>
    %cst_60 = arith.constant dense<0.000000e+00> : vector<8x64xf32>
    %87 = tpu.matmul %85, %86, %cst_60 {dimension_numbers = #tpu.dot_dimension_numbers<[1], [0], [0], [1], [0, 0, 1, 1], [], []>} : vector<8x64xf32>, vector<64x64xf32>, vector<8x64xf32> -> vector<8x64xf32>
    %cst_61 = arith.constant 5.000000e-01 : f32
    %88 = vector.broadcast %cst_61 : f32 to vector<8x64xf32>
    %89 = arith.cmpf olt, %87, %88 : vector<8x64xf32>
    %cst_62 = arith.constant 0.000000e+00 : f32
    %90 = vector.broadcast %cst_62 : f32 to vector<8x64xf32>
    %91 = arith.select %89, %74, %90 : vector<8x64xi1>, vector<8x64xf32>
    %92 = tpu.concatenate %91, %27 in 1 : vector<8x64xf32>, vector<8x64xf32> -> vector<8x128xf32>
    %c0_63 = arith.constant 0 : index
    %c0_64 = arith.constant 0 : index
    %93 = vector.load %arg16[%c0_63, %c0_64] : memref<8x128xf32, #tpu.memory_space<vmem>>, vector<8x128xf32>
    tpu.vector_store %arg16[%c0_63, %c0_64], %92 {strides = array<i32>} : memref<8x128xf32, #tpu.memory_space<vmem>>, vector<8x128xf32>,
    return
  }
  func.func @transform_0(%arg0: i32) -> (i32, i32) {
    %c0_i32 = arith.constant 0 : i32
    %c0_i32_0 = arith.constant 0 : i32
    return %arg0, %c0_i32 : i32, i32
  }
  func.func @transform_1(%arg0: i32) -> (i32, i32) {
    %c0_i32 = arith.constant 0 : i32
    %c0_i32_0 = arith.constant 0 : i32
    %c0_i32_1 = arith.constant 0 : i32
    return %c0_i32, %c0_i32_0 : i32, i32
  }
  func.func @transform_2(%arg0: i32) -> (i32, i32) {
    %c0_i32 = arith.constant 0 : i32
    %c0_i32_0 = arith.constant 0 : i32
    %c0_i32_1 = arith.constant 0 : i32
    return %c0_i32, %c0_i32_0 : i32, i32
  }
  func.func @transform_3(%arg0: i32) -> (i32, i32) {
    %c0_i32 = arith.constant 0 : i32
    %c0_i32_0 = arith.constant 0 : i32
    %c0_i32_1 = arith.constant 0 : i32
    return %c0_i32, %c0_i32_0 : i32, i32
  }
  func.func @transform_4(%arg0: i32) -> (i32, i32) {
    %c0_i32 = arith.constant 0 : i32
    %c0_i32_0 = arith.constant 0 : i32
    %c0_i32_1 = arith.constant 0 : i32
    return %c0_i32, %c0_i32_0 : i32, i32
  }
  func.func @transform_5(%arg0: i32) -> (i32, i32) {
    %c0_i32 = arith.constant 0 : i32
    %c0_i32_0 = arith.constant 0 : i32
    %c0_i32_1 = arith.constant 0 : i32
    return %c0_i32, %c0_i32_0 : i32, i32
  }
  func.func @transform_6(%arg0: i32) -> (i32, i32) {
    %c0_i32 = arith.constant 0 : i32
    %c0_i32_0 = arith.constant 0 : i32
    %c0_i32_1 = arith.constant 0 : i32
    return %c0_i32, %c0_i32_0 : i32, i32
  }
  func.func @transform_7(%arg0: i32) -> (i32, i32) {
    %c0_i32 = arith.constant 0 : i32
    %c0_i32_0 = arith.constant 0 : i32
    %c0_i32_1 = arith.constant 0 : i32
    return %c0_i32, %c0_i32_0 : i32, i32
  }
  func.func @transform_8(%arg0: i32) -> (i32, i32) {
    %c0_i32 = arith.constant 0 : i32
    %c0_i32_0 = arith.constant 0 : i32
    %c0_i32_1 = arith.constant 0 : i32
    return %c0_i32, %c0_i32_0 : i32, i32
  }
  func.func @transform_9(%arg0: i32) -> (i32, i32) {
    %c0_i32 = arith.constant 0 : i32
    %c0_i32_0 = arith.constant 0 : i32
    %c0_i32_1 = arith.constant 0 : i32
    return %c0_i32, %c0_i32_0 : i32, i32
  }
  func.func @transform_10(%arg0: i32) -> (i32, i32) {
    %c0_i32 = arith.constant 0 : i32
    %c0_i32_0 = arith.constant 0 : i32
    %c0_i32_1 = arith.constant 0 : i32
    return %c0_i32, %c0_i32_0 : i32, i32
  }
  func.func @transform_11(%arg0: i32) -> (i32, i32) {
    %c0_i32 = arith.constant 0 : i32
    %c0_i32_0 = arith.constant 0 : i32
    %c0_i32_1 = arith.constant 0 : i32
    return %c0_i32, %c0_i32_0 : i32, i32
  }
  func.func @transform_12(%arg0: i32) -> (i32, i32) {
    %c0_i32 = arith.constant 0 : i32
    %c0_i32_0 = arith.constant 0 : i32
    %c0_i32_1 = arith.constant 0 : i32
    return %c0_i32, %c0_i32_0 : i32, i32
  }
  func.func @transform_13(%arg0: i32) -> (i32, i32) {
    %c0_i32 = arith.constant 0 : i32
    %c0_i32_0 = arith.constant 0 : i32
    %c0_i32_1 = arith.constant 0 : i32
    return %c0_i32, %c0_i32_0 : i32, i32
  }
  func.func @transform_14(%arg0: i32) -> (i32, i32) {
    %c0_i32 = arith.constant 0 : i32
    %c0_i32_0 = arith.constant 0 : i32
    %c0_i32_1 = arith.constant 0 : i32
    return %c0_i32, %c0_i32_0 : i32, i32
  }
  func.func @transform_15(%arg0: i32) -> (i32, i32) {
    %c0_i32 = arith.constant 0 : i32
    %c0_i32_0 = arith.constant 0 : i32
    return %arg0, %c0_i32 : i32, i32
  }
}

</mosaic_0001>

<llo_original>
// kernel: tpu_custom_call.1
$region0: #{tpu_custom_call.1}
  #allocation0 [shape = 'u32[]', space=smem, size = 0x4, offset = 0x4, fixed_abs, tag = 'smem constant byte address 0x4 - core index']
  #allocation1 [shape = 'u32[72,128]{1,0:T(1,128)}', space=vmem, size = 0x9000, scoped, tag = 'internal scratch']
  #allocation2 [shape = 'f32[8,256]{1,0:T(8,128)}', space=vmem, size = 0x2000, scoped, tag = 'scratch operand']
  %s0 = inlined_call_operand.vmem [shape: f32[8,128], index: 0, kind: input, shape index: {}]
  %s1 = inlined_call_operand.vmem [shape: f32[128,64], index: 1, kind: input, shape index: {}]
  %s2 = inlined_call_operand.vmem [shape: f32[1,64], index: 2, kind: input, shape index: {}]
  %s3 = inlined_call_operand.vmem [shape: f32[32,32], index: 3, kind: input, shape index: {}]
  %s4 = inlined_call_operand.vmem [shape: f32[1,32], index: 4, kind: input, shape index: {}]
  %s5 = inlined_call_operand.vmem [shape: f32[32,64], index: 5, kind: input, shape index: {}]
  %s6 = inlined_call_operand.vmem [shape: f32[1,64], index: 6, kind: input, shape index: {}]
  %s7 = inlined_call_operand.vmem [shape: f32[32,32], index: 7, kind: input, shape index: {}]
  %s8 = inlined_call_operand.hbm [shape: f32[256,256], index: 8, kind: input, shape index: {}]
  %s9 = inlined_call_operand.vmem [shape: f32[1,256], index: 9, kind: input, shape index: {}]
  %s10 = inlined_call_operand.vmem [shape: f32[256,64], index: 10, kind: input, shape index: {}]
  %s11 = inlined_call_operand.vmem [shape: f32[1,64], index: 11, kind: input, shape index: {}]
  %s12 = inlined_call_operand.vmem [shape: f32[64,64], index: 12, kind: input, shape index: {}]
  %s13 = inlined_call_operand.vmem [shape: f32[64,64], index: 13, kind: input, shape index: {}]
  %s14 = inlined_call_operand.vmem [shape: f32[64,64], index: 14, kind: input, shape index: {}]
  %s15 = inlined_call_operand.hbm [shape: f32[8,128], index: 15, kind: output, shape index: {}]
  %s16 = sld [smem:[#allocation0]]
  $region74: #{tpu_custom_call.1} parent=0
    _
  %s18 = ssub.s32 1, %s16
  %s19 = scalar_select 0, %s18, %s16
  $region1: #{tpu_custom_call.1} parent=0
    #allocation3 [shape = 'u8[262144]{0}', space=vmem, size = 0x40000, scoped, tag = 'input window, operand 8, single buffered']
    #allocation4 [shape = 's32[1]{0}', space=sflag, size = 0x4, scoped, tag = 'scoped memory for tpu_custom_call.1']
    #allocation5 [shape = 's32[1]{0}', space=sflag, size = 0x4, scoped, tag = 'scoped memory for tpu_custom_call.1']
    #allocation6 [shape = 'u8[4096]{0}', space=vmem, size = 0x1000, scoped, tag = 'output window, operand 0, single buffered']
    %20 = vsyncpa [#allocation4], 0
    %21 = vsyncpa [#allocation5], 0
    // Predicated region
    $region2: #{tpu_custom_call.1} parent=1 // pred_check
      _
    $region3: #{tpu_custom_call.1} parent=1 // pred_check_branch
      %23 = sbr.rel (0) target = $region5
    $region4: #{tpu_custom_call.1} parent=1 // pred_region
      _
    $region5: #{tpu_custom_call.1} parent=1 // pred_fallthru
      _
    // Predicated region
    $region6: #{tpu_custom_call.1} parent=1 // pred_check
      _
    $region7: #{tpu_custom_call.1} parent=1 // pred_check_branch
      %25 = sbr.rel (0) target = $region9
    $region8: #{tpu_custom_call.1} parent=1 // pred_region
      _
    $region9: #{tpu_custom_call.1} parent=1 // pred_fallthru
      _
    // Predicated region
    $region10: #{tpu_custom_call.1} parent=1 // pred_check
      _
    $region11: #{tpu_custom_call.1} parent=1 // pred_check_branch
      %27 = sbr.rel (0) target = $region13
    $region12: #{tpu_custom_call.1} parent=1 // pred_region
      _
    $region13: #{tpu_custom_call.1} parent=1 // pred_fallthru
      _
    // Predicated region
    $region14: #{tpu_custom_call.1} parent=1 // pred_check
      _
    $region15: #{tpu_custom_call.1} parent=1 // pred_check_branch
      %29 = sbr.rel (0) target = $region17
    $region16: #{tpu_custom_call.1} parent=1 // pred_region
      _
    $region17: #{tpu_custom_call.1} parent=1 // pred_fallthru
      _
    // Predicated region
    $region18: #{tpu_custom_call.1} parent=1 // pred_check
      _
    $region19: #{tpu_custom_call.1} parent=1 // pred_check_branch
      %31 = sbr.rel (0) target = $region21
    $region20: #{tpu_custom_call.1} parent=1 // pred_region
      _
    $region21: #{tpu_custom_call.1} parent=1 // pred_fallthru
      _
    // Predicated region
    $region22: #{tpu_custom_call.1} parent=1 // pred_check
      _
    $region23: #{tpu_custom_call.1} parent=1 // pred_check_branch
      %33 = sbr.rel (0) target = $region25
    $region24: #{tpu_custom_call.1} parent=1 // pred_region
      _
    $region25: #{tpu_custom_call.1} parent=1 // pred_fallthru
      _
    // Predicated region
    $region26: #{tpu_custom_call.1} parent=1 // pred_check
      _
    $region27: #{tpu_custom_call.1} parent=1 // pred_check_branch
      %35 = sbr.rel (0) target = $region29
    $region28: #{tpu_custom_call.1} parent=1 // pred_region
      _
    $region29: #{tpu_custom_call.1} parent=1 // pred_fallthru
      _
    // Predicated region
    $region30: #{tpu_custom_call.1} parent=1 // pred_check
      _
    $region31: #{tpu_custom_call.1} parent=1 // pred_check_branch
      %37 = sbr.rel (0) target = $region33
    $region32: #{tpu_custom_call.1} parent=1 // pred_region
      _
    $region33: #{tpu_custom_call.1} parent=1 // pred_fallthru
      _
    // Predicated region
    $region34: #{tpu_custom_call.1} parent=1 // pred_check
      _
    $region35: #{tpu_custom_call.1} parent=1 // pred_check_branch
      %39 = sbr.rel (0) target = $region37
    $region36: #{tpu_custom_call.1} parent=1 // pred_region
      %41 = vsyncadd [#allocation4], 0
      %s42 = sshll.u32 %s8, 4
      %s43 = int_to_ptr.hbm [resolvable:$true] %s42
      %s44 = sshll.u32 [#allocation3], 4
      %s45 = int_to_ptr.vmem [resolvable:$true] %s44
      %50 = dma.hbm_to_vmem [thread:$0]  %s43, 8192, %s45, [#allocation4], 256, 256, 16
    $region37: #{tpu_custom_call.1} parent=1 // pred_fallthru
      _
    // Predicated region
    $region38: #{tpu_custom_call.1} parent=1 // pred_check
      _
    $region39: #{tpu_custom_call.1} parent=1 // pred_check_branch
      %52 = sbr.rel (0) target = $region41
    $region40: #{tpu_custom_call.1} parent=1 // pred_region
      _
    $region41: #{tpu_custom_call.1} parent=1 // pred_fallthru
      _
    // Predicated region
    $region42: #{tpu_custom_call.1} parent=1 // pred_check
      _
    $region43: #{tpu_custom_call.1} parent=1 // pred_check_branch
      %54 = sbr.rel (0) target = $region45
    $region44: #{tpu_custom_call.1} parent=1 // pred_region
      _
    $region45: #{tpu_custom_call.1} parent=1 // pred_fallthru
      _
    // Predicated region
    $region46: #{tpu_custom_call.1} parent=1 // pred_check
      _
    $region47: #{tpu_custom_call.1} parent=1 // pred_check_branch
      %56 = sbr.rel (0) target = $region49
    $region48: #{tpu_custom_call.1} parent=1 // pred_region
      _
    $region49: #{tpu_custom_call.1} parent=1 // pred_fallthru
      _
    // Predicated region
    $region50: #{tpu_custom_call.1} parent=1 // pred_check
      _
    $region51: #{tpu_custom_call.1} parent=1 // pred_check_branch
      %58 = sbr.rel (0) target = $region53
    $region52: #{tpu_custom_call.1} parent=1 // pred_region
      _
    $region53: #{tpu_custom_call.1} parent=1 // pred_fallthru
      _
    // Predicated region
    $region54: #{tpu_custom_call.1} parent=1 // pred_check
      _
    $region55: #{tpu_custom_call.1} parent=1 // pred_check_branch
      %60 = sbr.rel (0) target = $region57
    $region56: #{tpu_custom_call.1} parent=1 // pred_region
      _
    $region57: #{tpu_custom_call.1} parent=1 // pred_fallthru
      _
    // Predicated region
    $region58: #{tpu_custom_call.1} parent=1 // pred_check
      _
    $region59: #{tpu_custom_call.1} parent=1 // pred_check_branch
      %62 = sbr.rel (0) target = $region61
    $region60: #{tpu_custom_call.1} parent=1 // pred_region
      _
    $region61: #{tpu_custom_call.1} parent=1 // pred_fallthru
      _
    // Predicated region
    $region62: #{tpu_custom_call.1} parent=1 // pred_check
      _
    $region63: #{tpu_custom_call.1} parent=1 // pred_check_branch
      %64 = sbr.rel (0) target = $region65
    $region64: #{tpu_custom_call.1} parent=1 // pred_region
      %66 = dma.done [#allocation4], 8192
    $region65: #{tpu_custom_call.1} parent=1 // pred_fallthru
      _
    %v67 = vld [vmem:[%s0] sm:$0xff]
    %v68 = vld [vmem:[%s1] sm:$0xff]
    %v69 = vld [vmem:[%s1 + $0x8] sm:$0xff]
    %v70 = vld [vmem:[%s1 + $0x10] sm:$0xff]
    %v71 = vld [vmem:[%s1 + $0x18] sm:$0xff]
    %v72 = vld [vmem:[%s1 + $0x20] sm:$0xff]
    %v73 = vld [vmem:[%s1 + $0x28] sm:$0xff]
    %v74 = vld [vmem:[%s1 + $0x30] sm:$0xff]
    %v75 = vld [vmem:[%s1 + $0x38] sm:$0xff]
    %v76 = vld [vmem:[%s1 + $0x40] sm:$0xff]
    %v77 = vld [vmem:[%s1 + $0x48] sm:$0xff]
    %v78 = vld [vmem:[%s1 + $0x50] sm:$0xff]
    %v79 = vld [vmem:[%s1 + $0x58] sm:$0xff]
    %v80 = vld [vmem:[%s1 + $0x60] sm:$0xff]
    %v81 = vld [vmem:[%s1 + $0x68] sm:$0xff]
    %v82 = vld [vmem:[%s1 + $0x70] sm:$0xff]
    %v83 = vld [vmem:[%s1 + $0x78] sm:$0xff]
    %v84 = vld [vmem:[%s2] sm:$0x1]
    %v86 = vperm.slane %v84, 0
    %88 = vmatpush.msra.mxu0 %v83
    %89 = vmatpush.msra.mxu0 %v82
    %90 = vmatpush.msra.mxu0 %v81
    %91 = vmatpush.msra.mxu0 %v80
    %92 = vmatpush.msra.mxu0 %v79
    %93 = vmatpush.msra.mxu0 %v78
    %94 = vmatpush.msra.mxu0 %v77
    %95 = vmatpush.msra.mxu0 %v76
    %96 = vmatpush.msra.mxu0 %v75
    %97 = vmatpush.msra.mxu0 %v74
    %98 = vmatpush.msra.mxu0 %v73
    %99 = vmatpush.msra.mxu0 %v72
    %100 = vmatpush.msra.mxu0 %v71
    %101 = vmatpush.msra.mxu0 %v70
    %102 = vmatpush.msra.mxu0 %v69
    %103 = vmatpush.msra.mxu0 %v68
    %104 = vmatmul.f32.gmra.mxu0 %v67
    %v105 = vpop.f32.mrf.mxu0
    %v106 = vadd.f32 %v86, %v105
    %107 = vdwg.mxu0
    %vm108 = vcmp.gt.f32.partialorder %v106, 0.0
    %v109 = vmul.f32 %v106, 0.25
    %v110 = vsel %vm108, %v106, %v109
    %v111 = vld [vmem:[%s3] sm:$0xff]
    %v112 = vld [vmem:[%s3 + $0x8] sm:$0xff]
    %v113 = vld [vmem:[%s3 + $0x10] sm:$0xff]
    %v114 = vld [vmem:[%s3 + $0x18] sm:$0xff]
    %v115 = vld [vmem:[%s4] sm:$0x1]
    %v117 = vperm.slane %v115, 0
    %vm119 = vcmask 261120
    %v121 = vsel %vm119, %v110, 0
    %123 = vmatpush.msra.mxu0 0.0
    %124 = vmatpush.msra.mxu0 0.0
    %125 = vmatpush.msra.mxu0 0.0
    %126 = vmatpush.msra.mxu0 0.0
    %127 = vmatpush.msra.mxu0 0.0
    %128 = vmatpush.msra.mxu0 0.0
    %129 = vmatpush.msra.mxu0 0.0
    %130 = vmatpush.msra.mxu0 0.0
    %131 = vmatpush.msra.mxu0 0.0
    %132 = vmatpush.msra.mxu0 0.0
    %133 = vmatpush.msra.mxu0 0.0
    %134 = vmatpush.msra.mxu0 0.0
    %135 = vmatpush.msra.mxu0 %v114
    %136 = vmatpush.msra.mxu0 %v113
    %137 = vmatpush.msra.mxu0 %v112
    %138 = vmatpush.msra.mxu0 %v111
    %139 = vmatmul.f32.gmra.mxu0 %v121
    %v140 = vpop.f32.mrf.mxu0
    %v141 = vadd.f32 %v117, %v140
    %142 = vdwg.mxu0
    %vm143 = vcmp.gt.f32.partialorder %v141, 0.0
    %v144 = vmul.f32 %v141, 0.25
    %v145 = vsel %vm143, %v141, %v144
    %v146 = vld [vmem:[%s5] sm:$0xff]
    %v147 = vld [vmem:[%s5 + $0x8] sm:$0xff]
    %v148 = vld [vmem:[%s5 + $0x10] sm:$0xff]
    %v149 = vld [vmem:[%s5 + $0x18] sm:$0xff]
    %v150 = vld [vmem:[%s6] sm:$0x1]
    %v152 = vperm.slane %v150, 0
    %v155 = vsel %vm119, %v145, 0
    %157 = vmatpush.msra.mxu0 0.0
    %158 = vmatpush.msra.mxu0 0.0
    %159 = vmatpush.msra.mxu0 0.0
    %160 = vmatpush.msra.mxu0 0.0
    %161 = vmatpush.msra.mxu0 0.0
    %162 = vmatpush.msra.mxu0 0.0
    %163 = vmatpush.msra.mxu0 0.0
    %164 = vmatpush.msra.mxu0 0.0
    %165 = vmatpush.msra.mxu0 0.0
    %166 = vmatpush.msra.mxu0 0.0
    %167 = vmatpush.msra.mxu0 0.0
    %168 = vmatpush.msra.mxu0 0.0
    %169 = vmatpush.msra.mxu0 %v149
    %170 = vmatpush.msra.mxu0 %v148
    %171 = vmatpush.msra.mxu0 %v147
    %172 = vmatpush.msra.mxu0 %v146
    %173 = vmatmul.f32.gmra.mxu0 %v155
    %v174 = vpop.f32.mrf.mxu0
    %v175 = vadd.f32 %v152, %v174
    %176 = vdwg.mxu0
    %v177 = vld [vmem:[%s7] sm:$0xff]
    %v178 = vld [vmem:[%s7 + $0x8] sm:$0xff]
    %v179 = vld [vmem:[%s7 + $0x10] sm:$0xff]
    %v180 = vld [vmem:[%s7 + $0x18] sm:$0xff]
    %v181 = vtanh.pop %v106
    %183 = vrot.lane.b32.xlu0 %v181, 96
    %v184 = vpop.permute.xlu0 %183
    %186 = vst.msk [vmem:[#allocation2] sm:$0xff] %vm119, %v184
    %v187 = vsel %vm119, %v184, 0
    %189 = vmatpush.msra.mxu0 0.0
    %190 = vmatpush.msra.mxu0 0.0
    %191 = vmatpush.msra.mxu0 0.0
    %192 = vmatpush.msra.mxu0 0.0
    %193 = vmatpush.msra.mxu0 0.0
    %194 = vmatpush.msra.mxu0 0.0
    %195 = vmatpush.msra.mxu0 0.0
    %196 = vmatpush.msra.mxu0 0.0
    %197 = vmatpush.msra.mxu0 0.0
    %198 = vmatpush.msra.mxu0 0.0
    %199 = vmatpush.msra.mxu0 0.0
    %200 = vmatpush.msra.mxu0 0.0
    %201 = vmatpush.msra.mxu0 %v180
    %202 = vmatpush.msra.mxu0 %v179
    %203 = vmatpush.msra.mxu0 %v178
    %204 = vmatpush.msra.mxu0 %v177
    %205 = vmatmul.f32.gmra.mxu0 %v187
    %v206 = vpop.f32.mrf.mxu0
    %v207 = vadd.f32 0.0, %v206
    %208 = vdwg.mxu0
    %210 = vrot.lane.b32.xlu0 %v207, 32
    %v211 = vpop.permute.xlu0 %210
    %v213 = vadd.f32 %v106, %v211
    %v214 = vtanh.pop %v213
    %vm215 = vcmask 523520
    %216 = vst.msk [vmem:[#allocation2] sm:$0xff] %vm215, %v214
    %218 = vrot.lane.b32.xlu0 %v214, 96
    %v219 = vpop.permute.xlu0 %218
    %v220 = vsel %vm119, %v219, 0
    %222 = vmatpush.msra.mxu0 0.0
    %223 = vmatpush.msra.mxu0 0.0
    %224 = vmatpush.msra.mxu0 0.0
    %225 = vmatpush.msra.mxu0 0.0
    %226 = vmatpush.msra.mxu0 0.0
    %227 = vmatpush.msra.mxu0 0.0
    %228 = vmatpush.msra.mxu0 0.0
    %229 = vmatpush.msra.mxu0 0.0
    %230 = vmatpush.msra.mxu0 0.0
    %231 = vmatpush.msra.mxu0 0.0
    %232 = vmatpush.msra.mxu0 0.0
    %233 = vmatpush.msra.mxu0 0.0
    %234 = vmatpush.msra.mxu0 %v180
    %235 = vmatpush.msra.mxu0 %v179
    %236 = vmatpush.msra.mxu0 %v178
    %237 = vmatpush.msra.mxu0 %v177
    %238 = vmatmul.f32.gmra.mxu0 %v220
    %v239 = vpop.f32.mrf.mxu0
    %v240 = vadd.f32 0.0, %v239
    %241 = vdwg.mxu0
    %243 = vrot.lane.b32.xlu0 %v240, 32
    %v244 = vpop.permute.xlu0 %243
    %v246 = vadd.f32 %v106, %v244
    %v247 = vtanh.pop %v246
    %249 = vrot.lane.b32.xlu0 %v247, 32
    %v250 = vpop.permute.xlu0 %249
    %vm252 = vcmask 785920
    %253 = vst.msk [vmem:[#allocation2] sm:$0xff] %vm252, %v250
    %254 = vrot.lane.b32.xlu0 %v247, 96
    %v255 = vpop.permute.xlu0 %254
    %v256 = vsel %vm119, %v255, 0
    %258 = vmatpush.msra.mxu0 0.0
    %259 = vmatpush.msra.mxu0 0.0
    %260 = vmatpush.msra.mxu0 0.0
    %261 = vmatpush.msra.mxu0 0.0
    %262 = vmatpush.msra.mxu0 0.0
    %263 = vmatpush.msra.mxu0 0.0
    %264 = vmatpush.msra.mxu0 0.0
    %265 = vmatpush.msra.mxu0 0.0
    %266 = vmatpush.msra.mxu0 0.0
    %267 = vmatpush.msra.mxu0 0.0
    %268 = vmatpush.msra.mxu0 0.0
    %269 = vmatpush.msra.mxu0 0.0
    %270 = vmatpush.msra.mxu0 %v180
    %271 = vmatpush.msra.mxu0 %v179
    %272 = vmatpush.msra.mxu0 %v178
    %273 = vmatpush.msra.mxu0 %v177
    %274 = vmatmul.f32.gmra.mxu0 %v256
    %v275 = vpop.f32.mrf.mxu0
    %v276 = vadd.f32 0.0, %v275
    %277 = vdwg.mxu0
    %279 = vrot.lane.b32.xlu0 %v276, 32
    %v280 = vpop.permute.xlu0 %279
    %v282 = vadd.f32 %v106, %v280
    %v283 = vtanh.pop %v282
    %285 = vrot.lane.b32.xlu0 %v283, 64
    %v286 = vpop.permute.xlu0 %285
    %vm288 = vcmask 1048320
    %289 = vst.msk [vmem:[#allocation2] sm:$0xff] %vm288, %v286
    %290 = vrot.lane.b32.xlu0 %v283, 96
    %v291 = vpop.permute.xlu0 %290
    %v292 = vsel %vm119, %v291, 0
    %294 = vmatpush.msra.mxu0 0.0
    %295 = vmatpush.msra.mxu0 0.0
    %296 = vmatpush.msra.mxu0 0.0
    %297 = vmatpush.msra.mxu0 0.0
    %298 = vmatpush.msra.mxu0 0.0
    %299 = vmatpush.msra.mxu0 0.0
    %300 = vmatpush.msra.mxu0 0.0
    %301 = vmatpush.msra.mxu0 0.0
    %302 = vmatpush.msra.mxu0 0.0
    %303 = vmatpush.msra.mxu0 0.0
    %304 = vmatpush.msra.mxu0 0.0
    %305 = vmatpush.msra.mxu0 0.0
    %306 = vmatpush.msra.mxu0 %v180
    %307 = vmatpush.msra.mxu0 %v179
    %308 = vmatpush.msra.mxu0 %v178
    %309 = vmatpush.msra.mxu0 %v177
    %310 = vmatmul.f32.gmra.mxu0 %v292
    %v311 = vpop.f32.mrf.mxu0
    %v312 = vadd.f32 0.0, %v311
    %313 = vdwg.mxu0
    %315 = vrot.lane.b32.xlu0 %v312, 32
    %v316 = vpop.permute.xlu0 %315
    %v318 = vadd.f32 %v106, %v316
    %v319 = vtanh.pop %v318
    %321 = vrot.lane.b32.xlu0 %v319, 96
    %v322 = vpop.permute.xlu0 %321
    %324 = vst.msk [vmem:[#allocation2 + $0x8] sm:$0xff] %vm119, %v322
    %v325 = vsel %vm119, %v322, 0
    %327 = vmatpush.msra.mxu0 0.0
    %328 = vmatpush.msra.mxu0 0.0
    %329 = vmatpush.msra.mxu0 0.0
    %330 = vmatpush.msra.mxu0 0.0
    %331 = vmatpush.msra.mxu0 0.0
    %332 = vmatpush.msra.mxu0 0.0
    %333 = vmatpush.msra.mxu0 0.0
    %334 = vmatpush.msra.mxu0 0.0
    %335 = vmatpush.msra.mxu0 0.0
    %336 = vmatpush.msra.mxu0 0.0
    %337 = vmatpush.msra.mxu0 0.0
    %338 = vmatpush.msra.mxu0 0.0
    %339 = vmatpush.msra.mxu0 %v180
    %340 = vmatpush.msra.mxu0 %v179
    %341 = vmatpush.msra.mxu0 %v178
    %342 = vmatpush.msra.mxu0 %v177
    %343 = vmatmul.f32.gmra.mxu0 %v325
    %v344 = vpop.f32.mrf.mxu0
    %v345 = vadd.f32 0.0, %v344
    %346 = vdwg.mxu0
    %348 = vrot.lane.b32.xlu0 %v345, 32
    %v349 = vpop.permute.xlu0 %348
    %v351 = vadd.f32 %v106, %v349
    %v352 = vtanh.pop %v351
    %353 = vst.msk [vmem:[#allocation2 + $0x8] sm:$0xff] %vm215, %v352
    %355 = vrot.lane.b32.xlu0 %v352, 96
    %v356 = vpop.permute.xlu0 %355
    %v357 = vsel %vm119, %v356, 0
    %359 = vmatpush.msra.mxu0 0.0
    %360 = vmatpush.msra.mxu0 0.0
    %361 = vmatpush.msra.mxu0 0.0
    %362 = vmatpush.msra.mxu0 0.0
    %363 = vmatpush.msra.mxu0 0.0
    %364 = vmatpush.msra.mxu0 0.0
    %365 = vmatpush.msra.mxu0 0.0
    %366 = vmatpush.msra.mxu0 0.0
    %367 = vmatpush.msra.mxu0 0.0
    %368 = vmatpush.msra.mxu0 0.0
    %369 = vmatpush.msra.mxu0 0.0
    %370 = vmatpush.msra.mxu0 0.0
    %371 = vmatpush.msra.mxu0 %v180
    %372 = vmatpush.msra.mxu0 %v179
    %373 = vmatpush.msra.mxu0 %v178
    %374 = vmatpush.msra.mxu0 %v177
    %375 = vmatmul.f32.gmra.mxu0 %v357
    %v376 = vpop.f32.mrf.mxu0
    %v377 = vadd.f32 0.0, %v376
    %378 = vdwg.mxu0
    %380 = vrot.lane.b32.xlu0 %v377, 32
    %v381 = vpop.permute.xlu0 %380
    %v383 = vadd.f32 %v106, %v381
    %v384 = vtanh.pop %v383
    %386 = vrot.lane.b32.xlu0 %v384, 32
    %v387 = vpop.permute.xlu0 %386
    %389 = vst.msk [vmem:[#allocation2 + $0x8] sm:$0xff] %vm252, %v387
    %390 = vrot.lane.b32.xlu0 %v384, 96
    %v391 = vpop.permute.xlu0 %390
    %v392 = vsel %vm119, %v391, 0
    %394 = vmatpush.msra.mxu0 0.0
    %395 = vmatpush.msra.mxu0 0.0
    %396 = vmatpush.msra.mxu0 0.0
    %397 = vmatpush.msra.mxu0 0.0
    %398 = vmatpush.msra.mxu0 0.0
    %399 = vmatpush.msra.mxu0 0.0
    %400 = vmatpush.msra.mxu0 0.0
    %401 = vmatpush.msra.mxu0 0.0
    %402 = vmatpush.msra.mxu0 0.0
    %403 = vmatpush.msra.mxu0 0.0
    %404 = vmatpush.msra.mxu0 0.0
    %405 = vmatpush.msra.mxu0 0.0
    %406 = vmatpush.msra.mxu0 %v180
    %407 = vmatpush.msra.mxu0 %v179
    %408 = vmatpush.msra.mxu0 %v178
    %409 = vmatpush.msra.mxu0 %v177
    %410 = vmatmul.f32.gmra.mxu0 %v392
    %v411 = vpop.f32.mrf.mxu0
    %v412 = vadd.f32 0.0, %v411
    %413 = vdwg.mxu0
    %415 = vrot.lane.b32.xlu0 %v412, 32
    %v416 = vpop.permute.xlu0 %415
    %v418 = vadd.f32 %v106, %v416
    %v419 = vtanh.pop %v418
    %421 = vrot.lane.b32.xlu0 %v419, 64
    %v422 = vpop.permute.xlu0 %421
    %424 = vst.msk [vmem:[#allocation2 + $0x8] sm:$0xff] %vm288, %v422
    %v425 = vld [vmem:[#allocation2] sm:$0xff]
    %v426 = vld [vmem:[#allocation2 + $0x8] sm:$0xff]
    %v427 = vld [vmem:[#allocation3] sm:$0xff]
    %v428 = vld [vmem:[#allocation3 + $0x8] sm:$0xff]
    %v429 = vld [vmem:[#allocation3 + $0x10] sm:$0xff]
    %v430 = vld [vmem:[#allocation3 + $0x18] sm:$0xff]
    %v431 = vld [vmem:[#allocation3 + $0x20] sm:$0xff]
    %v432 = vld [vmem:[#allocation3 + $0x28] sm:$0xff]
    %v433 = vld [vmem:[#allocation3 + $0x30] sm:$0xff]
    %v434 = vld [vmem:[#allocation3 + $0x38] sm:$0xff]
    %v435 = vld [vmem:[#allocation3 + $0x40] sm:$0xff]
    %v436 = vld [vmem:[#allocation3 + $0x48] sm:$0xff]
    %v437 = vld [vmem:[#allocation3 + $0x50] sm:$0xff]
    %v438 = vld [vmem:[#allocation3 + $0x58] sm:$0xff]
    %v439 = vld [vmem:[#allocation3 + $0x60] sm:$0xff]
    %v440 = vld [vmem:[#allocation3 + $0x68] sm:$0xff]
    %v441 = vld [vmem:[#allocation3 + $0x70] sm:$0xff]
    %v442 = vld [vmem:[#allocation3 + $0x78] sm:$0xff]
    %v443 = vld [vmem:[#allocation3 + $0x80] sm:$0xff]
    %v444 = vld [vmem:[#allocation3 + $0x88] sm:$0xff]
    %v445 = vld [vmem:[#allocation3 + $0x90] sm:$0xff]
    %v446 = vld [vmem:[#allocation3 + $0x98] sm:$0xff]
    %v447 = vld [vmem:[#allocation3 + $0xa0] sm:$0xff]
    %v448 = vld [vmem:[#allocation3 + $0xa8] sm:$0xff]
    %v449 = vld [vmem:[#allocation3 + $0xb0] sm:$0xff]
    %v450 = vld [vmem:[#allocation3 + $0xb8] sm:$0xff]
    %v451 = vld [vmem:[#allocation3 + $0xc0] sm:$0xff]
    %v452 = vld [vmem:[#allocation3 + $0xc8] sm:$0xff]
    %v453 = vld [vmem:[#allocation3 + $0xd0] sm:$0xff]
    %v454 = vld [vmem:[#allocation3 + $0xd8] sm:$0xff]
    %v455 = vld [vmem:[#allocation3 + $0xe0] sm:$0xff]
    %v456 = vld [vmem:[#allocation3 + $0xe8] sm:$0xff]
    %v457 = vld [vmem:[#allocation3 + $0xf0] sm:$0xff]
    %v458 = vld [vmem:[#allocation3 + $0xf8] sm:$0xff]
    %v459 = vld [vmem:[#allocation3 + $0x100] sm:$0xff]
    %v460 = vld [vmem:[#allocation3 + $0x108] sm:$0xff]
    %v461 = vld [vmem:[#allocation3 + $0x110] sm:$0xff]
    %v462 = vld [vmem:[#allocation3 + $0x118] sm:$0xff]
    %v463 = vld [vmem:[#allocation3 + $0x120] sm:$0xff]
    %v464 = vld [vmem:[#allocation3 + $0x128] sm:$0xff]
    %v465 = vld [vmem:[#allocation3 + $0x130] sm:$0xff]
    %v466 = vld [vmem:[#allocation3 + $0x138] sm:$0xff]
    %v467 = vld [vmem:[#allocation3 + $0x140] sm:$0xff]
    %v468 = vld [vmem:[#allocation3 + $0x148] sm:$0xff]
    %v469 = vld [vmem:[#allocation3 + $0x150] sm:$0xff]
    %v470 = vld [vmem:[#allocation3 + $0x158] sm:$0xff]
    %v471 = vld [vmem:[#allocation3 + $0x160] sm:$0xff]
    %v472 = vld [vmem:[#allocation3 + $0x168] sm:$0xff]
    %v473 = vld [vmem:[#allocation3 + $0x170] sm:$0xff]
    %v474 = vld [vmem:[#allocation3 + $0x178] sm:$0xff]
    %v475 = vld [vmem:[#allocation3 + $0x180] sm:$0xff]
    %v476 = vld [vmem:[#allocation3 + $0x188] sm:$0xff]
    %v477 = vld [vmem:[#allocation3 + $0x190] sm:$0xff]
    %v478 = vld [vmem:[#allocation3 + $0x198] sm:$0xff]
    %v479 = vld [vmem:[#allocation3 + $0x1a0] sm:$0xff]
    %v480 = vld [vmem:[#allocation3 + $0x1a8] sm:$0xff]
    %v481 = vld [vmem:[#allocation3 + $0x1b0] sm:$0xff]
    %v482 = vld [vmem:[#allocation3 + $0x1b8] sm:$0xff]
    %v483 = vld [vmem:[#allocation3 + $0x1c0] sm:$0xff]
    %v484 = vld [vmem:[#allocation3 + $0x1c8] sm:$0xff]
    %v485 = vld [vmem:[#allocation3 + $0x1d0] sm:$0xff]
    %v486 = vld [vmem:[#allocation3 + $0x1d8] sm:$0xff]
    %v487 = vld [vmem:[#allocation3 + $0x1e0] sm:$0xff]
    %v488 = vld [vmem:[#allocation3 + $0x1e8] sm:$0xff]
    %v489 = vld [vmem:[#allocation3 + $0x1f0] sm:$0xff]
    %v490 = vld [vmem:[#allocation3 + $0x1f8] sm:$0xff]
    %v491 = vld [vmem:[%s9] sm:$0x3]
    %v493 = vperm.slane %v491, 0
    %v494 = vperm.slane %v491, 1
    %497 = vmatpush.msra.mxu0 %v457
    %498 = vmatpush.msra.mxu0 %v455
    %499 = vmatpush.msra.mxu0 %v453
    %500 = vmatpush.msra.mxu0 %v451
    %501 = vmatpush.msra.mxu0 %v449
    %502 = vmatpush.msra.mxu0 %v447
    %503 = vmatpush.msra.mxu0 %v445
    %504 = vmatpush.msra.mxu0 %v443
    %505 = vmatpush.msra.mxu0 %v441
    %506 = vmatpush.msra.mxu0 %v439
    %507 = vmatpush.msra.mxu0 %v437
    %508 = vmatpush.msra.mxu0 %v435
    %509 = vmatpush.msra.mxu0 %v433
    %510 = vmatpush.msra.mxu0 %v431
    %511 = vmatpush.msra.mxu0 %v429
    %512 = vmatpush.msra.mxu0 %v427
    %513 = vmatmul.f32.gmra.mxu0 %v425
    %v514 = vpop.f32.mrf.mxu0
    %v515 = vadd.f32 %v493, %v514
    %516 = vdwg.mxu0
    %517 = vmatpush.msra.mxu0 %v489
    %518 = vmatpush.msra.mxu0 %v487
    %519 = vmatpush.msra.mxu0 %v485
    %520 = vmatpush.msra.mxu0 %v483
    %521 = vmatpush.msra.mxu0 %v481
    %522 = vmatpush.msra.mxu0 %v479
    %523 = vmatpush.msra.mxu0 %v477
    %524 = vmatpush.msra.mxu0 %v475
    %525 = vmatpush.msra.mxu0 %v473
    %526 = vmatpush.msra.mxu0 %v471
    %527 = vmatpush.msra.mxu0 %v469
    %528 = vmatpush.msra.mxu0 %v467
    %529 = vmatpush.msra.mxu0 %v465
    %530 = vmatpush.msra.mxu0 %v463
    %531 = vmatpush.msra.mxu0 %v461
    %532 = vmatpush.msra.mxu0 %v459
    %533 = vmatmul.f32.gmra.mxu0 %v426
    %v534 = vpop.f32.mrf.mxu0
    %v535 = vadd.f32 %v515, %v534
    %536 = vdwg.mxu0
    %537 = vmatpush.msra.mxu0 %v458
    %538 = vmatpush.msra.mxu0 %v456
    %539 = vmatpush.msra.mxu0 %v454
    %540 = vmatpush.msra.mxu0 %v452
    %541 = vmatpush.msra.mxu0 %v450
    %542 = vmatpush.msra.mxu0 %v448
    %543 = vmatpush.msra.mxu0 %v446
    %544 = vmatpush.msra.mxu0 %v444
    %545 = vmatpush.msra.mxu0 %v442
    %546 = vmatpush.msra.mxu0 %v440
    %547 = vmatpush.msra.mxu0 %v438
    %548 = vmatpush.msra.mxu0 %v436
    %549 = vmatpush.msra.mxu0 %v434
    %550 = vmatpush.msra.mxu0 %v432
    %551 = vmatpush.msra.mxu0 %v430
    %552 = vmatpush.msra.mxu0 %v428
    %553 = vmatmul.f32.gmra.mxu0 %v425
    %v554 = vpop.f32.mrf.mxu0
    %v555 = vadd.f32 %v494, %v554
    %556 = vdwg.mxu0
    %557 = vmatpush.msra.mxu0 %v490
    %558 = vmatpush.msra.mxu0 %v488
    %559 = vmatpush.msra.mxu0 %v486
    %560 = vmatpush.msra.mxu0 %v484
    %561 = vmatpush.msra.mxu0 %v482
    %562 = vmatpush.msra.mxu0 %v480
    %563 = vmatpush.msra.mxu0 %v478
    %564 = vmatpush.msra.mxu0 %v476
    %565 = vmatpush.msra.mxu0 %v474
    %566 = vmatpush.msra.mxu0 %v472
    %567 = vmatpush.msra.mxu0 %v470
    %568 = vmatpush.msra.mxu0 %v468
    %569 = vmatpush.msra.mxu0 %v466
    %570 = vmatpush.msra.mxu0 %v464
    %571 = vmatpush.msra.mxu0 %v462
    %572 = vmatpush.msra.mxu0 %v460
    %573 = vmatmul.f32.gmra.mxu0 %v426
    %v574 = vpop.f32.mrf.mxu0
    %v575 = vadd.f32 %v555, %v574
    %576 = vdwg.mxu0
    %vm577 = vcmp.gt.f32.partialorder %v535, 0.0
    %vm578 = vcmp.gt.f32.partialorder %v575, 0.0
    %v579 = vmul.f32 %v535, 0.25
    %v580 = vmul.f32 %v575, 0.25
    %v581 = vsel %vm577, %v535, %v579
    %v582 = vsel %vm578, %v575, %v580
    %v583 = vld [vmem:[%s10] sm:$0xff]
    %v584 = vld [vmem:[%s10 + $0x8] sm:$0xff]
    %v585 = vld [vmem:[%s10 + $0x10] sm:$0xff]
    %v586 = vld [vmem:[%s10 + $0x18] sm:$0xff]
    %v587 = vld [vmem:[%s10 + $0x20] sm:$0xff]
    %v588 = vld [vmem:[%s10 + $0x28] sm:$0xff]
    %v589 = vld [vmem:[%s10 + $0x30] sm:$0xff]
    %v590 = vld [vmem:[%s10 + $0x38] sm:$0xff]
    %v591 = vld [vmem:[%s10 + $0x40] sm:$0xff]
    %v592 = vld [vmem:[%s10 + $0x48] sm:$0xff]
    %v593 = vld [vmem:[%s10 + $0x50] sm:$0xff]
    %v594 = vld [vmem:[%s10 + $0x58] sm:$0xff]
    %v595 = vld [vmem:[%s10 + $0x60] sm:$0xff]
    %v596 = vld [vmem:[%s10 + $0x68] sm:$0xff]
    %v597 = vld [vmem:[%s10 + $0x70] sm:$0xff]
    %v598 = vld [vmem:[%s10 + $0x78] sm:$0xff]
    %v599 = vld [vmem:[%s10 + $0x80] sm:$0xff]
    %v600 = vld [vmem:[%s10 + $0x88] sm:$0xff]
    %v601 = vld [vmem:[%s10 + $0x90] sm:$0xff]
    %v602 = vld [vmem:[%s10 + $0x98] sm:$0xff]
    %v603 = vld [vmem:[%s10 + $0xa0] sm:$0xff]
    %v604 = vld [vmem:[%s10 + $0xa8] sm:$0xff]
    %v605 = vld [vmem:[%s10 + $0xb0] sm:$0xff]
    %v606 = vld [vmem:[%s10 + $0xb8] sm:$0xff]
    %v607 = vld [vmem:[%s10 + $0xc0] sm:$0xff]
    %v608 = vld [vmem:[%s10 + $0xc8] sm:$0xff]
    %v609 = vld [vmem:[%s10 + $0xd0] sm:$0xff]
    %v610 = vld [vmem:[%s10 + $0xd8] sm:$0xff]
    %v611 = vld [vmem:[%s10 + $0xe0] sm:$0xff]
    %v612 = vld [vmem:[%s10 + $0xe8] sm:$0xff]
    %v613 = vld [vmem:[%s10 + $0xf0] sm:$0xff]
    %v614 = vld [vmem:[%s10 + $0xf8] sm:$0xff]
    %v615 = vld [vmem:[%s11] sm:$0x1]
    %v617 = vperm.slane %v615, 0
    %619 = vmatpush.msra.mxu0 %v598
    %620 = vmatpush.msra.mxu0 %v597
    %621 = vmatpush.msra.mxu0 %v596
    %622 = vmatpush.msra.mxu0 %v595
    %623 = vmatpush.msra.mxu0 %v594
    %624 = vmatpush.msra.mxu0 %v593
    %625 = vmatpush.msra.mxu0 %v592
    %626 = vmatpush.msra.mxu0 %v591
    %627 = vmatpush.msra.mxu0 %v590
    %628 = vmatpush.msra.mxu0 %v589
    %629 = vmatpush.msra.mxu0 %v588
    %630 = vmatpush.msra.mxu0 %v587
    %631 = vmatpush.msra.mxu0 %v586
    %632 = vmatpush.msra.mxu0 %v585
    %633 = vmatpush.msra.mxu0 %v584
    %634 = vmatpush.msra.mxu0 %v583
    %635 = vmatmul.f32.gmra.mxu0 %v581
    %v636 = vpop.f32.mrf.mxu0
    %v637 = vadd.f32 %v617, %v636
    %638 = vdwg.mxu0
    %639 = vmatpush.msra.mxu0 %v614
    %640 = vmatpush.msra.mxu0 %v613
    %641 = vmatpush.msra.mxu0 %v612
    %642 = vmatpush.msra.mxu0 %v611
    %643 = vmatpush.msra.mxu0 %v610
    %644 = vmatpush.msra.mxu0 %v609
    %645 = vmatpush.msra.mxu0 %v608
    %646 = vmatpush.msra.mxu0 %v607
    %647 = vmatpush.msra.mxu0 %v606
    %648 = vmatpush.msra.mxu0 %v605
    %649 = vmatpush.msra.mxu0 %v604
    %650 = vmatpush.msra.mxu0 %v603
    %651 = vmatpush.msra.mxu0 %v602
    %652 = vmatpush.msra.mxu0 %v601
    %653 = vmatpush.msra.mxu0 %v600
    %654 = vmatpush.msra.mxu0 %v599
    %655 = vmatmul.f32.gmra.mxu0 %v582
    %v656 = vpop.f32.mrf.mxu0
    %v657 = vadd.f32 %v637, %v656
    %658 = vdwg.mxu0
    %v659 = vld [vmem:[%s12] sm:$0xff]
    %v660 = vld [vmem:[%s12 + $0x8] sm:$0xff]
    %v661 = vld [vmem:[%s12 + $0x10] sm:$0xff]
    %v662 = vld [vmem:[%s12 + $0x18] sm:$0xff]
    %v663 = vld [vmem:[%s12 + $0x20] sm:$0xff]
    %v664 = vld [vmem:[%s12 + $0x28] sm:$0xff]
    %v665 = vld [vmem:[%s12 + $0x30] sm:$0xff]
    %v666 = vld [vmem:[%s12 + $0x38] sm:$0xff]
    %vm667 = vcmask 523264
    %v669 = vsel %vm667, %v657, 0
    %671 = vmatpush.msra.mxu0 0.0
    %672 = vmatpush.msra.mxu0 0.0
    %673 = vmatpush.msra.mxu0 0.0
    %674 = vmatpush.msra.mxu0 0.0
    %675 = vmatpush.msra.mxu0 0.0
    %676 = vmatpush.msra.mxu0 0.0
    %677 = vmatpush.msra.mxu0 0.0
    %678 = vmatpush.msra.mxu0 0.0
    %679 = vmatpush.msra.mxu0 %v666
    %680 = vmatpush.msra.mxu0 %v665
    %681 = vmatpush.msra.mxu0 %v664
    %682 = vmatpush.msra.mxu0 %v663
    %683 = vmatpush.msra.mxu0 %v662
    %684 = vmatpush.msra.mxu0 %v661
    %685 = vmatpush.msra.mxu0 %v660
    %686 = vmatpush.msra.mxu0 %v659
    %687 = vmatmul.f32.gmra.mxu0 %v669
    %v688 = vpop.f32.mrf.mxu0
    %v689 = vadd.f32 0.0, %v688
    %690 = vdwg.mxu0
    %vm691 = vcmp.ge.f32.partialorder %v689, %v657
    %v692 = vsel %vm691, 1, 0
    %v693 = vcvt.s32.f32 %v692
    %v694 = vld [vmem:[%s13] sm:$0xff]
    %v695 = vld [vmem:[%s13 + $0x8] sm:$0xff]
    %v696 = vld [vmem:[%s13 + $0x10] sm:$0xff]
    %v697 = vld [vmem:[%s13 + $0x18] sm:$0xff]
    %v698 = vld [vmem:[%s13 + $0x20] sm:$0xff]
    %v699 = vld [vmem:[%s13 + $0x28] sm:$0xff]
    %v700 = vld [vmem:[%s13 + $0x30] sm:$0xff]
    %v701 = vld [vmem:[%s13 + $0x38] sm:$0xff]
    %v703 = vsel %vm667, %v693, 0
    %705 = vmatpush.msra.mxu0 0.0
    %706 = vmatpush.msra.mxu0 0.0
    %707 = vmatpush.msra.mxu0 0.0
    %708 = vmatpush.msra.mxu0 0.0
    %709 = vmatpush.msra.mxu0 0.0
    %710 = vmatpush.msra.mxu0 0.0
    %711 = vmatpush.msra.mxu0 0.0
    %712 = vmatpush.msra.mxu0 0.0
    %713 = vmatpush.msra.mxu0 %v701
    %714 = vmatpush.msra.mxu0 %v700
    %715 = vmatpush.msra.mxu0 %v699
    %716 = vmatpush.msra.mxu0 %v698
    %717 = vmatpush.msra.mxu0 %v697
    %718 = vmatpush.msra.mxu0 %v696
    %719 = vmatpush.msra.mxu0 %v695
    %720 = vmatpush.msra.mxu0 %v694
    %721 = vmatmul.f32.gmra.mxu0 %v703
    %v722 = vpop.f32.mrf.mxu0
    %v723 = vadd.f32 0.0, %v722
    %724 = vdwg.mxu0
    %vm725 = vcmp.gt.f32.partialorder %v723, 6.5
    %v726 = vsel %vm725, 1, 0
    %v727 = vcvt.s32.f32 %v726
    %v728 = vld [vmem:[%s14] sm:$0xff]
    %v729 = vld [vmem:[%s14 + $0x8] sm:$0xff]
    %v730 = vld [vmem:[%s14 + $0x10] sm:$0xff]
    %v731 = vld [vmem:[%s14 + $0x18] sm:$0xff]
    %v732 = vld [vmem:[%s14 + $0x20] sm:$0xff]
    %v733 = vld [vmem:[%s14 + $0x28] sm:$0xff]
    %v734 = vld [vmem:[%s14 + $0x30] sm:$0xff]
    %v735 = vld [vmem:[%s14 + $0x38] sm:$0xff]
    %v737 = vsel %vm667, %v727, 0
    %739 = vmatpush.msra.mxu0 0.0
    %740 = vmatpush.msra.mxu0 0.0
    %741 = vmatpush.msra.mxu0 0.0
    %742 = vmatpush.msra.mxu0 0.0
    %743 = vmatpush.msra.mxu0 0.0
    %744 = vmatpush.msra.mxu0 0.0
    %745 = vmatpush.msra.mxu0 0.0
    %746 = vmatpush.msra.mxu0 0.0
    %747 = vmatpush.msra.mxu0 %v735
    %748 = vmatpush.msra.mxu0 %v734
    %749 = vmatpush.msra.mxu0 %v733
    %750 = vmatpush.msra.mxu0 %v732
    %751 = vmatpush.msra.mxu0 %v731
    %752 = vmatpush.msra.mxu0 %v730
    %753 = vmatpush.msra.mxu0 %v729
    %754 = vmatpush.msra.mxu0 %v728
    %755 = vmatmul.f32.gmra.mxu0 %v737
    %v756 = vpop.f32.mrf.mxu0
    %v757 = vadd.f32 0.0, %v756
    %758 = vdwg.mxu0
    %vm759 = vcmp.lt.f32.partialorder %v757, 0.5
    %v760 = vsel %vm759, %v657, 0.0
    %762 = vrot.lane.b32.xlu0 %v175, 64
    %v763 = vpop.permute.xlu0 %762
    %v765 = vsel %vm667, %v760, %v763
    %766 = vst [vmem:[#allocation6] sm:$0xff] %v765
    // Predicated region
    $region66: #{tpu_custom_call.1} parent=1 // pred_check
      _
    $region67: #{tpu_custom_call.1} parent=1 // pred_check_branch
      %768 = sbr.rel (0) target = $region69
    $region68: #{tpu_custom_call.1} parent=1 // pred_region
      %770 = vsyncadd [#allocation5], 0
      %s772 = sshll.u32 [#allocation6], 4
      %s773 = int_to_ptr.vmem [resolvable:$true] %s772
      %s774 = sshll.u32 %s15, 4
      %s775 = int_to_ptr.hbm [resolvable:$true] %s774
      %777 = dma.vmem_to_hbm [thread:$0]  %s773, 128, %s775, [#allocation5]
    $region69: #{tpu_custom_call.1} parent=1 // pred_fallthru
      _
    // Predicated region
    $region70: #{tpu_custom_call.1} parent=1 // pred_check
      _
    $region71: #{tpu_custom_call.1} parent=1 // pred_check_branch
      %779 = sbr.rel (0) target = $region73
    $region72: #{tpu_custom_call.1} parent=1 // pred_region
      %781 = dma.done [#allocation5], 128
    $region73: #{tpu_custom_call.1} parent=1 // pred_fallthru
      _
    %782 = vsyncpa [#allocation4], 1
    %783 = vsyncpa [#allocation5], 1

</llo_original>
